<compile_context>
chip_gen: v7x
topology: tpu7x:2x2x1
jax: 0.10.0
libtpu: 0.0.40
codegen_flags: <defaults>
</compile_context>

<pallas_src>
import jax
import jax.numpy as jnp
from jax.experimental import pallas as pl
from jax.experimental.pallas import tpu as pltpu

# ---------------- model hyper-params (small, consistent with the module) -------
B = 2            # batch
C_IN = 4         # input channels
IMG = 16         # input spatial size  -> quadrant size l = 8
PATCH = 4        # patch size of the stand-in patch-embed
L = IMG // 2     # quadrant spatial size
G = L // PATCH   # patch grid per side = 2
P = G * G        # patches per quadrant = 4
D_PATCH = C_IN * PATCH * PATCH   # patch dim = 64
N_FEAT = 128     # n_features (swin feature dim)
ATT_HID = 256    # att_layer pattern 'A' hidden size
N_CLS = 5        # head output
NQ = 4           # number of quadrants

# packed weight-slab layout (single lane-dense f32 array, ~110 KiB)
SLAB_COLS = ATT_HID + 128            # 256 att cols + 5 head cols, lane-padded to 384
SLAB_ROWS = D_PATCH + 8              # 64 matmul rows + one aligned 8-row tail tile
ROW_BIAS = D_PATCH                   # fused bias row
ROW_WA2 = D_PATCH + 1                # attention output weight (stored as a row)


def _fused_kernel(hmean_ref,   # (4*B, D_PATCH)  pre-meaned patches, q-major then b
                  w_ref,       # (SLAB_ROWS, SLAB_COLS) packed weight slab
                  out_ref):    # (B, N_CLS)
    # --- single wide MXU pass: [att pre-tanh hidden | per-quadrant head logits] --
    w_mat = w_ref[0:D_PATCH, :]                       # (64, 384) = [We@Wa1 | We@Wh | 0]
    tail = w_ref[D_PATCH:SLAB_ROWS, :]                # (8, 384) aligned tail tile
    bias = tail[0:1, :]                               # (1, 384) = [be@Wa1+ba1 | be@Wh+bh | 0]
    wa2 = tail[1:2, 0:ATT_HID]                        # (1, 256) attention output weight row

    wide = jnp.dot(hmean_ref[...], w_mat,
                   preferred_element_type=jnp.float32) + bias           # (4B, 384)
    hidden = wide[:, 0:ATT_HID]                       # (4B, 256) pre-tanh attention hidden
    logits = wide[:, ATT_HID:ATT_HID + N_CLS]         # (4B, 5)  per-quadrant head logits

    # --- attention score: tanh (EUP) -> VPU mul -> lane reduce (XLU) -------------
    # ba2 is omitted: a constant added to every quadrant score cancels in softmax.
    s = jnp.sum(jnp.tanh(hidden) * wa2, axis=-1, keepdims=True)         # (4B, 1)

    # --- softmax over the 4 quadrants per batch row (rows q*B + b) ---------------
    # log-tree group reductions over sublanes via XLU rolls (shifts 2B then B).
    t = jnp.maximum(s, pltpu.roll(s, shift=2 * B, axis=0))
    m = jnp.maximum(t, pltpu.roll(t, shift=B, axis=0))                  # per-row group max
    e = jnp.exp(s - m)
    d = e + pltpu.roll(e, shift=2 * B, axis=0)
    d = d + pltpu.roll(d, shift=B, axis=0)                              # per-row group sum
    wgt = e / d                                                         # (4B, 1) softmax wts

    # --- weighted fusion directly on the tiny per-quadrant head logits -----------
    # out = sum_q w_q * (h_q @ Wh + bh)   (exact: softmax weights sum to 1)
    wl = logits * wgt                                                   # (4B, 5)
    acc = wl + pltpu.roll(wl, shift=2 * B, axis=0)
    acc = acc + pltpu.roll(acc, shift=B, axis=0)                        # rows 0:B = full q-sum
    out_ref[...] = acc[0:B, :]


def _quadrant_patch_means(x):
    """x: (B, C, H, W) NCHW -> (4*B, D_PATCH) pre-averaged patch vectors.

    Row q*B + b holds the mean over the P patches of quadrant q, batch b (the swin
    spatial mean is folded in front of the patch-embed matmul).  Quadrant order
    matches the module: [:l,:l], [:l,l:], [l:,:l], [l:,l:].
    """
    t = x.reshape(B, C_IN, 2, G, PATCH, 2, G, PATCH)   # (B,C,qh,gh,pi,qw,gw,pj)
    m = t.mean(axis=(3, 6))                            # (B,C,qh,pi,qw,pj)
    m = jnp.transpose(m, (2, 4, 0, 1, 3, 5))           # (qh,qw,B,C,pi,pj)
    return m.reshape(NQ * B, D_PATCH)


def pack_params(params):
    """Fold everything into a single lane-dense weight slab (done once at param prep).

    Layout: rows 0:64 = [We@Wa1 | We@Wh], row 64 = [be@Wa1+ba1 | be@Wh+bh],
    row 65 = wa2 (as a row).  ba2 is intentionally dropped (cancels in softmax).
    """
    we, be = params["we"], params["be"]
    wa1, ba1 = params["wa1"], params["ba1"]
    wh, bh = params["wh"], params["bh"]

    w_att = we @ wa1                         # (64, 256)
    w_head = we @ wh                         # (64, 5)
    b_att = be @ wa1 + ba1                   # (1, 256)
    b_head = be @ wh + bh                    # (1, 5)

    slab = jnp.zeros((SLAB_ROWS, SLAB_COLS), jnp.float32)
    slab = slab.at[0:D_PATCH, 0:ATT_HID].set(w_att)
    slab = slab.at[0:D_PATCH, ATT_HID:ATT_HID + N_CLS].set(w_head)
    slab = slab.at[ROW_BIAS, 0:ATT_HID].set(b_att[0])
    slab = slab.at[ROW_BIAS, ATT_HID:ATT_HID + N_CLS].set(b_head[0])
    slab = slab.at[ROW_WA2, 0:ATT_HID].set(params["wa2r"][0])
    return slab


@jax.jit
def my_model_forward(x, w_slab):
    hmean = _quadrant_patch_means(x.astype(jnp.float32))
    vmem = pl.BlockSpec(memory_space=pltpu.MemorySpace.VMEM)
    # No grid: resident footprint ~0.12 MiB, far below VMEM on v5e/v6e/v7x.
    # TODO(synk): if deployed at larger batch, add a leading "parallel" grid axis
    # over batch to shard across v7x's two TensorCores.
    return pl.pallas_call(
        _fused_kernel,
        out_shape=jax.ShapeDtypeStruct((B, N_CLS), jnp.float32),
        in_specs=[vmem, vmem],
        out_specs=vmem,
        cost_estimate=pl.CostEstimate(
            flops=2 * (NQ * B) * D_PATCH * (ATT_HID + N_CLS),
            transcendentals=(NQ * B) * ATT_HID + NQ * B,
            bytes_accessed=4 * (NQ * B * D_PATCH + SLAB_ROWS * SLAB_COLS + B * N_CLS),
        ),
    )(hmean, w_slab)


def _reference(x, params):
    """Pure-JAX reference mirroring the original module structure
    (per-quadrant unfold -> embed -> spatial mean -> att -> softmax -> fuse -> head).
    Uses the original unfused weights, including ba2."""
    x = x.astype(jnp.float32)
    quads = [x[:, :, :L, :L], x[:, :, :L, L:], x[:, :, L:, :L], x[:, :, L:, L:]]
    wa2 = params["wa2r"].T                                  # (ATT_HID, 1)
    hs, ss = [], []
    for xq in quads:
        t = xq.reshape(B, C_IN, G, PATCH, G, PATCH)
        t = jnp.transpose(t, (0, 2, 4, 1, 3, 5)).reshape(B * P, D_PATCH)
        emb = t @ params["we"] + params["be"]               # (B*P, N_FEAT)
        h_q = emb.reshape(B, P, N_FEAT).mean(axis=1)        # (B, N_FEAT)
        z = jnp.tanh(h_q @ params["wa1"] + params["ba1"])
        s_q = z @ wa2 + params["ba2"]
        hs.append(h_q)
        ss.append(s_q)
    scores = jnp.concatenate(ss, axis=1)                    # (B, 4)
    w = jax.nn.softmax(scores, axis=1)
    h = sum(hs[q] * w[:, q:q + 1] for q in range(NQ))
    return h @ params["wh"] + params["bh"]


def _init_params(key):
    ks = jax.random.split(key, 8)

    def lin(k, fan_in, shape):
        bound = 1.0 / (fan_in ** 0.5)
        return jax.random.uniform(k, shape, jnp.float32, -bound, bound)

    return {
        "we":   lin(ks[0], D_PATCH, (D_PATCH, N_FEAT)),
        "be":   lin(ks[1], D_PATCH, (1, N_FEAT)),
        "wa1":  lin(ks[2], N_FEAT, (N_FEAT, ATT_HID)),
        "ba1":  lin(ks[3], N_FEAT, (1, ATT_HID)),
        "wa2r": lin(ks[4], ATT_HID, (1, ATT_HID)),   # stored transposed (lane-dense row)
        "ba2":  lin(ks[5], ATT_HID, (1, 1)),          # kept for the reference; cancels in softmax
        "wh":   lin(ks[6], N_FEAT, (N_FEAT, N_CLS)),
        "bh":   lin(ks[7], N_FEAT, (1, N_CLS)),
    }


if __name__ == "__main__":
    key = jax.random.PRNGKey(0)
    kx, kp = jax.random.split(key)
    x = jax.random.normal(kx, (B, C_IN, IMG, IMG), jnp.float32)   # NCHW input
    params = _init_params(kp)
    w_slab = pack_params(params)                                  # one-time param packing

    out = jax.block_until_ready(my_model_forward(x, w_slab))
    ref = _reference(x, params)

    assert out.shape == (B, N_CLS)
    # kernel pre-folds We@Wa1 / We@Wh, folds the spatial mean before the embed, and
    # drops ba2 (exact in the softmax) -> only tiny f32 reordering differences remain.
    assert jnp.allclose(out, ref, rtol=1e-4, atol=1e-4), "mismatch vs reference"
    print("KERNEL_OK")
</pallas_src>

<mosaic_0001>
module attributes {stable_mosaic.version = 11 : i64} {
  func.func @_fused_kernel(%arg0: memref<8x64xf32, #tpu.memory_space<vmem>>, %arg1: memref<72x384xf32, #tpu.memory_space<vmem>>, %arg2: memref<2x5xf32, #tpu.memory_space<vmem>>) attributes {dimension_semantics = [], scalar_prefetch = 0 : i64, scratch_operands = 0 : i64, tpu.core_type = #tpu.core_type<tc>} {
    %c0 = arith.constant 0 : index
    %c0_0 = arith.constant 0 : index
    %0 = vector.load %arg1[%c0, %c0_0] : memref<72x384xf32, #tpu.memory_space<vmem>>, vector<64x384xf32>
    %c64 = arith.constant 64 : index
    %c0_1 = arith.constant 0 : index
    %1 = vector.load %arg1[%c64, %c0_1] : memref<72x384xf32, #tpu.memory_space<vmem>>, vector<8x384xf32>
    %2 = vector.extract_strided_slice %1 {offsets = [0, 0], sizes = [1, 384], strides = [1, 1]} : vector<8x384xf32> to vector<1x384xf32>
    %3 = vector.extract_strided_slice %1 {offsets = [1, 0], sizes = [1, 256], strides = [1, 1]} : vector<8x384xf32> to vector<1x256xf32>
    %c0_2 = arith.constant 0 : index
    %c0_3 = arith.constant 0 : index
    %4 = vector.load %arg0[%c0_2, %c0_3] : memref<8x64xf32, #tpu.memory_space<vmem>>, vector<8x64xf32>
    %cst = arith.constant dense<0.000000e+00> : vector<8x384xf32>
    %5 = tpu.matmul %4, %0, %cst {dimension_numbers = #tpu.dot_dimension_numbers<[1], [0], [0], [1], [0, 0, 1, 1], [], []>} : vector<8x64xf32>, vector<64x384xf32>, vector<8x384xf32> -> vector<8x384xf32>
    %6 = vector.broadcast %2 : vector<1x384xf32> to vector<8x384xf32>
    %7 = arith.addf %5, %6 : vector<8x384xf32>
    %8 = vector.extract_strided_slice %7 {offsets = [0, 0], sizes = [8, 256], strides = [1, 1]} : vector<8x384xf32> to vector<8x256xf32>
    %9 = vector.extract_strided_slice %7 {offsets = [0, 256], sizes = [8, 5], strides = [1, 1]} : vector<8x384xf32> to vector<8x5xf32>
    %10 = math.tanh %8 : vector<8x256xf32>
    %11 = vector.broadcast %3 : vector<1x256xf32> to vector<8x256xf32>
    %12 = arith.mulf %10, %11 : vector<8x256xf32>
    %cst_4 = arith.constant dense<0.000000e+00> : vector<8xf32>
    %13 = vector.multi_reduction <add>, %12, %cst_4 [1] : vector<8x256xf32> to vector<8xf32>
    %14 = vector.shape_cast %13 : vector<8xf32> to vector<8x1xf32>
    %c4_i32 = arith.constant 4 : i32
    %15 = tpu.dynamic_rotate %14 by %c4_i32 dim 0 : vector<8x1xf32>, i32 -> vector<8x1xf32>
    %16 = arith.maximumf %14, %15 : vector<8x1xf32>
    %c2_i32 = arith.constant 2 : i32
    %17 = tpu.dynamic_rotate %16 by %c2_i32 dim 0 : vector<8x1xf32>, i32 -> vector<8x1xf32>
    %18 = arith.maximumf %16, %17 : vector<8x1xf32>
    %19 = arith.subf %14, %18 : vector<8x1xf32>
    %20 = math.exp %19 : vector<8x1xf32>
    %c4_i32_5 = arith.constant 4 : i32
    %21 = tpu.dynamic_rotate %20 by %c4_i32_5 dim 0 : vector<8x1xf32>, i32 -> vector<8x1xf32>
    %22 = arith.addf %20, %21 : vector<8x1xf32>
    %c2_i32_6 = arith.constant 2 : i32
    %23 = tpu.dynamic_rotate %22 by %c2_i32_6 dim 0 : vector<8x1xf32>, i32 -> vector<8x1xf32>
    %24 = arith.addf %22, %23 : vector<8x1xf32>
    %25 = arith.divf %20, %24 : vector<8x1xf32>
    %26 = vector.broadcast %25 : vector<8x1xf32> to vector<8x5xf32>
    %27 = arith.mulf %9, %26 : vector<8x5xf32>
    %c4_i32_7 = arith.constant 4 : i32
    %28 = tpu.dynamic_rotate %27 by %c4_i32_7 dim 0 : vector<8x5xf32>, i32 -> vector<8x5xf32>
    %29 = arith.addf %27, %28 : vector<8x5xf32>
    %c2_i32_8 = arith.constant 2 : i32
    %30 = tpu.dynamic_rotate %29 by %c2_i32_8 dim 0 : vector<8x5xf32>, i32 -> vector<8x5xf32>
    %31 = arith.addf %29, %30 : vector<8x5xf32>
    %32 = vector.extract_strided_slice %31 {offsets = [0, 0], sizes = [2, 5], strides = [1, 1]} : vector<8x5xf32> to vector<2x5xf32>
    %c0_9 = arith.constant 0 : index
    %c0_10 = arith.constant 0 : index
    %33 = vector.load %arg2[%c0_9, %c0_10] : memref<2x5xf32, #tpu.memory_space<vmem>>, vector<2x5xf32>
    tpu.vector_store %arg2[%c0_9, %c0_10], %32 {strides = array<i32>} : memref<2x5xf32, #tpu.memory_space<vmem>>, vector<2x5xf32>,
    return
  }
}

</mosaic_0001>

<llo_original>
// kernel: my_model_forward.1
$region0: #{my_model_forward.1}
  #allocation0 [shape = 'u32[]', space=smem, size = 0x4, offset = 0x4, fixed_abs, tag = 'smem constant byte address 0x4 - core index']
  #allocation1 [shape = 'u32[144,128]{1,0:T(1,128)}', space=vmem, size = 0x12000, scoped, tag = 'internal scratch']
  %s0 = inlined_call_operand.vmem [shape: f32[8,64], index: 0, kind: input, shape index: {}]
  %s1 = inlined_call_operand.vmem [shape: f32[72,384], index: 1, kind: input, shape index: {}]
  %s2 = inlined_call_operand.hbm [shape: f32[2,5], index: 2, kind: output, shape index: {}]
  %s3 = sld [smem:[#allocation0]]
  $region18: #{my_model_forward.1} parent=0
    _
  %s5 = ssub.s32 1, %s3
  %s6 = scalar_select 0, %s5, %s3
  $region1: #{my_model_forward.1} parent=0
    #allocation2 [shape = 'u8[1024]{0}', space=vmem, size = 0x400, scoped, tag = 'output window, operand 0, single buffered']
    #allocation3 [shape = 's32[1]{0}', space=sflag, size = 0x4, scoped, tag = 'scoped memory for my_model_forward.1']
    %7 = vsyncpa [#allocation3], 0
    // Predicated region
    $region2: #{my_model_forward.1} parent=1 // pred_check
      _
    $region3: #{my_model_forward.1} parent=1 // pred_check_branch
      %9 = sbr.rel (0) target = $region5
    $region4: #{my_model_forward.1} parent=1 // pred_region
      _
    $region5: #{my_model_forward.1} parent=1 // pred_fallthru
      _
    // Predicated region
    $region6: #{my_model_forward.1} parent=1 // pred_check
      _
    $region7: #{my_model_forward.1} parent=1 // pred_check_branch
      %11 = sbr.rel (0) target = $region9
    $region8: #{my_model_forward.1} parent=1 // pred_region
      _
    $region9: #{my_model_forward.1} parent=1 // pred_fallthru
      _
    %v12 = vld [vmem:[%s1] sm:$0xff]
    %v13 = vld [vmem:[%s1 + $0x8] sm:$0xff]
    %v14 = vld [vmem:[%s1 + $0x10] sm:$0xff]
    %v15 = vld [vmem:[%s1 + $0x18] sm:$0xff]
    %v16 = vld [vmem:[%s1 + $0x20] sm:$0xff]
    %v17 = vld [vmem:[%s1 + $0x28] sm:$0xff]
    %v18 = vld [vmem:[%s1 + $0x30] sm:$0xff]
    %v19 = vld [vmem:[%s1 + $0x38] sm:$0xff]
    %v20 = vld [vmem:[%s1 + $0x40] sm:$0xff]
    %v21 = vld [vmem:[%s1 + $0x48] sm:$0xff]
    %v22 = vld [vmem:[%s1 + $0x50] sm:$0xff]
    %v23 = vld [vmem:[%s1 + $0x58] sm:$0xff]
    %v24 = vld [vmem:[%s1 + $0x60] sm:$0xff]
    %v25 = vld [vmem:[%s1 + $0x68] sm:$0xff]
    %v26 = vld [vmem:[%s1 + $0x70] sm:$0xff]
    %v27 = vld [vmem:[%s1 + $0x78] sm:$0xff]
    %v28 = vld [vmem:[%s1 + $0x80] sm:$0xff]
    %v29 = vld [vmem:[%s1 + $0x88] sm:$0xff]
    %v30 = vld [vmem:[%s1 + $0x90] sm:$0xff]
    %v31 = vld [vmem:[%s1 + $0x98] sm:$0xff]
    %v32 = vld [vmem:[%s1 + $0xa0] sm:$0xff]
    %v33 = vld [vmem:[%s1 + $0xa8] sm:$0xff]
    %v34 = vld [vmem:[%s1 + $0xb0] sm:$0xff]
    %v35 = vld [vmem:[%s1 + $0xb8] sm:$0xff]
    %v36 = vld [vmem:[%s1 + $0xc0] sm:$0xff]
    %v37 = vld [vmem:[%s1 + $0xc8] sm:$0xff]
    %v38 = vld [vmem:[%s1 + $0xd0] sm:$0xff]
    %v39 = vld [vmem:[%s0] sm:$0xff]
    %v40 = vlaneseq
    %v41 = vshrl.u32 %v40, 7
    %v42 = vsub.s32 0, %v41
    %v43 = vrot.slane %v36, %v42
    %v44 = vlaneseq
    %v45 = vshrl.u32 %v44, 7
    %v46 = vsub.s32 0, %v45
    %v47 = vrot.slane %v37, %v46
    %v48 = vlaneseq
    %v49 = vshrl.u32 %v48, 7
    %v50 = vsub.s32 0, %v49
    %v51 = vrot.slane %v38, %v50
    %vm52 = vcmask 523264
    %v54 = vsel %vm52, %v39, 0
    %56 = vmatprep.subr.mxu0 %v13
    %57 = vmatpush1.msra.mxu0 %v12
    %58 = vmatprep.subr.mxu0 %v16
    %59 = vmatpush1.msra.mxu0 %v15
    %60 = vmatprep.subr.mxu0 %v19
    %61 = vmatpush1.msra.mxu0 %v18
    %62 = vmatprep.subr.mxu0 %v22
    %63 = vmatpush1.msra.mxu0 %v21
    %64 = vmatprep.subr.mxu0 %v25
    %65 = vmatpush1.msra.mxu0 %v24
    %66 = vmatprep.subr.mxu0 %v28
    %67 = vmatpush1.msra.mxu0 %v27
    %68 = vmatprep.subr.mxu0 %v31
    %69 = vmatpush1.msra.mxu0 %v30
    %70 = vmatprep.subr.mxu0 %v34
    %71 = vmatpush1.msra.mxu0 %v33
    %72 = vmatprep.subr.mxu0 0.0
    %73 = vmatpush1.msra.mxu0 0.0
    %74 = vmatprep.subr.mxu0 0.0
    %75 = vmatpush1.msra.mxu0 0.0
    %76 = vmatprep.subr.mxu0 0.0
    %77 = vmatpush1.msra.mxu0 0.0
    %78 = vmatprep.subr.mxu0 0.0
    %79 = vmatpush1.msra.mxu0 0.0
    %80 = vmatprep.subr.mxu0 0.0
    %81 = vmatpush1.msra.mxu0 0.0
    %82 = vmatprep.subr.mxu0 0.0
    %83 = vmatpush1.msra.mxu0 0.0
    %84 = vmatprep.subr.mxu0 0.0
    %85 = vmatpush1.msra.mxu0 0.0
    %86 = vmatprep.subr.mxu0 0.0
    %87 = vmatpush1.msra.mxu0 0.0
    %88 = vmatprep.subr.mxu0 0.0
    %89 = vmatpush1.msra.mxu0 0.0
    %90 = vmatprep.subr.mxu0 0.0
    %91 = vmatpush1.msra.mxu0 0.0
    %92 = vmatprep.subr.mxu0 0.0
    %93 = vmatpush1.msra.mxu0 0.0
    %94 = vmatprep.subr.mxu0 0.0
    %95 = vmatpush1.msra.mxu0 0.0
    %96 = vmatprep.subr.mxu0 0.0
    %97 = vmatpush1.msra.mxu0 0.0
    %98 = vmatprep.subr.mxu0 0.0
    %99 = vmatpush1.msra.mxu0 0.0
    %100 = vmatprep.subr.mxu0 0.0
    %101 = vmatpush1.msra.mxu0 0.0
    %102 = vmatprep.subr.mxu0 0.0
    %103 = vmatpush1.msra.mxu0 0.0
    %104 = vmatprep.subr.mxu0 0.0
    %105 = vmatpush1.msra.mxu0 0.0
    %106 = vmatprep.subr.mxu0 0.0
    %107 = vmatpush1.msra.mxu0 0.0
    %108 = vmatprep.subr.mxu0 0.0
    %109 = vmatpush1.msra.mxu0 0.0
    %110 = vmatprep.subr.mxu0 0.0
    %111 = vmatpush1.msra.mxu0 0.0
    %112 = vmatprep.subr.mxu0 0.0
    %113 = vmatpush1.msra.mxu0 0.0
    %114 = vmatprep.subr.mxu0 0.0
    %115 = vmatpush1.msra.mxu0 0.0
    %116 = vmatprep.subr.mxu0 0.0
    %117 = vmatpush1.msra.mxu0 0.0
    %118 = vmatprep.subr.mxu0 0.0
    %119 = vmatpush1.msra.mxu0 0.0
    %120 = vmatprep.mubr.f32.mxu0 0.0
    %121 = vmatmul.mubr.f32.gmra.mrb[0].mxu0 %v54
    %v122 = vpop.f32.mrb[0].mxu0
    %v123 = vadd.f32 %v43, %v122
    %v124 = vpop.f32.mrb[0].mxu0
    %v125 = vadd.f32 %v47, %v124
    %126 = vdwg.mxu0
    %127 = vmatprep.subr.mxu0 0.0
    %128 = vmatpush1.msra.mxu0 %v14
    %129 = vmatprep.subr.mxu0 0.0
    %130 = vmatpush1.msra.mxu0 %v17
    %131 = vmatprep.subr.mxu0 0.0
    %132 = vmatpush1.msra.mxu0 %v20
    %133 = vmatprep.subr.mxu0 0.0
    %134 = vmatpush1.msra.mxu0 %v23
    %135 = vmatprep.subr.mxu0 0.0
    %136 = vmatpush1.msra.mxu0 %v26
    %137 = vmatprep.subr.mxu0 0.0
    %138 = vmatpush1.msra.mxu0 %v29
    %139 = vmatprep.subr.mxu0 0.0
    %140 = vmatpush1.msra.mxu0 %v32
    %141 = vmatprep.subr.mxu0 0.0
    %142 = vmatpush1.msra.mxu0 %v35
    %143 = vmatprep.subr.mxu0 0.0
    %144 = vmatpush1.msra.mxu0 0.0
    %145 = vmatprep.subr.mxu0 0.0
    %146 = vmatpush1.msra.mxu0 0.0
    %147 = vmatprep.subr.mxu0 0.0
    %148 = vmatpush1.msra.mxu0 0.0
    %149 = vmatprep.subr.mxu0 0.0
    %150 = vmatpush1.msra.mxu0 0.0
    %151 = vmatprep.subr.mxu0 0.0
    %152 = vmatpush1.msra.mxu0 0.0
    %153 = vmatprep.subr.mxu0 0.0
    %154 = vmatpush1.msra.mxu0 0.0
    %155 = vmatprep.subr.mxu0 0.0
    %156 = vmatpush1.msra.mxu0 0.0
    %157 = vmatprep.subr.mxu0 0.0
    %158 = vmatpush1.msra.mxu0 0.0
    %159 = vmatprep.subr.mxu0 0.0
    %160 = vmatpush1.msra.mxu0 0.0
    %161 = vmatprep.subr.mxu0 0.0
    %162 = vmatpush1.msra.mxu0 0.0
    %163 = vmatprep.subr.mxu0 0.0
    %164 = vmatpush1.msra.mxu0 0.0
    %165 = vmatprep.subr.mxu0 0.0
    %166 = vmatpush1.msra.mxu0 0.0
    %167 = vmatprep.subr.mxu0 0.0
    %168 = vmatpush1.msra.mxu0 0.0
    %169 = vmatprep.subr.mxu0 0.0
    %170 = vmatpush1.msra.mxu0 0.0
    %171 = vmatprep.subr.mxu0 0.0
    %172 = vmatpush1.msra.mxu0 0.0
    %173 = vmatprep.subr.mxu0 0.0
    %174 = vmatpush1.msra.mxu0 0.0
    %175 = vmatprep.subr.mxu0 0.0
    %176 = vmatpush1.msra.mxu0 0.0
    %177 = vmatprep.subr.mxu0 0.0
    %178 = vmatpush1.msra.mxu0 0.0
    %179 = vmatprep.subr.mxu0 0.0
    %180 = vmatpush1.msra.mxu0 0.0
    %181 = vmatprep.subr.mxu0 0.0
    %182 = vmatpush1.msra.mxu0 0.0
    %183 = vmatprep.subr.mxu0 0.0
    %184 = vmatpush1.msra.mxu0 0.0
    %185 = vmatprep.subr.mxu0 0.0
    %186 = vmatpush1.msra.mxu0 0.0
    %187 = vmatprep.subr.mxu0 0.0
    %188 = vmatpush1.msra.mxu0 0.0
    %189 = vmatprep.subr.mxu0 0.0
    %190 = vmatpush1.msra.mxu0 0.0
    %191 = vmatprep.mubr.f32.mxu0 0.0
    %192 = vmatmul.mubr.f32.gmra.mrb[0].mxu0 %v54
    %v193 = vpop.f32.mrb[0].mxu0
    %v194 = vadd.f32 %v51, %v193
    %v195 = vpop.f32.mrb[0].mxu0
    %196 = vdwg.mxu0
    %v197 = vtanh.pop %v123
    %v198 = vtanh.pop %v125
    %v199 = vlaneseq
    %v200 = vshrl.u32 %v199, 7
    %v201 = vsub.s32 1, %v200
    %v202 = vrot.slane %v36, %v201
    %v203 = vlaneseq
    %v204 = vshrl.u32 %v203, 7
    %v205 = vsub.s32 1, %v204
    %v206 = vrot.slane %v37, %v205
    %v207 = vmul.f32 %v197, %v202
    %v208 = vmul.f32 %v198, %v206
    %v209 = vadd.f32 %v207, %v208
    %210 = vadd.xlane.f32.xlu0 %v209
    %v211 = vpop.xlane.xlu0 %210
    %v212 = vrot.slane %v211, 4
    %v213 = vmax.f32 %v211, %v212
    %v214 = vrot.slane %v213, 6
    %v215 = vmax.f32 %v213, %v214
    %v216 = vsub.f32 %v211, %v215
    %v217 = vmul.f32 %v216, 1.442695
    %v218 = vpow.pop %v217
    %v219 = vrot.slane %v218, 4
    %v220 = vadd.f32 %v218, %v219
    %v221 = vrot.slane %v220, 6
    %v222 = vadd.f32 %v220, %v221
    %v223 = vrcp.pop %v222
    %v224 = vmul.f32 %v218, %v223
    %226 = vset.pattern.permute.xlu0 0
    %227 = vperm.xlu0 %226, %v224
    %v228 = vpop.permute.xlu0 %227
    %v230 = vmul.f32 %v194, %v228
    %v231 = vrot.slane %v230, 4
    %v232 = vadd.f32 %v230, %v231
    %v233 = vrot.slane %v232, 6
    %v234 = vadd.f32 %v232, %v233
    %vm235 = vcmask 33792
    %236 = vst.msk [vmem:[#allocation2] sm:$0x3] %vm235, %v234
    // Predicated region
    $region10: #{my_model_forward.1} parent=1 // pred_check
      _
    $region11: #{my_model_forward.1} parent=1 // pred_check_branch
      %238 = sbr.rel (0) target = $region13
    $region12: #{my_model_forward.1} parent=1 // pred_region
      %s240 = ssub.s32 32, 32
      %241 = vsyncadd [#allocation3], %s240
      %s243 = sshll.u32 [#allocation2], 4
      %s244 = int_to_ptr.vmem [resolvable:$true] %s243
      %246 = dma.vmem_to_hbm [thread:$0]  %s244, 32, %s2, [#allocation3]
    $region13: #{my_model_forward.1} parent=1 // pred_fallthru
      _
    // Predicated region
    $region14: #{my_model_forward.1} parent=1 // pred_check
      _
    $region15: #{my_model_forward.1} parent=1 // pred_check_branch
      %248 = sbr.rel (0) target = $region17
    $region16: #{my_model_forward.1} parent=1 // pred_region
      %249 = dma.done [#allocation3], 32
    $region17: #{my_model_forward.1} parent=1 // pred_fallthru
      _
    %250 = vsyncpa [#allocation3], 1

</llo_original>
